<compile_context>
chip_gen: v7x
topology: tpu7x:2x2x1
jax: 0.10.0
libtpu: 0.0.40
codegen_flags: <defaults>
</compile_context>

<pallas_src>
import jax
import jax.numpy as jnp
from jax.experimental import pallas as pl
from jax.experimental.pallas import tpu as pltpu


def _downsample_kernel(wf_ref, xm_ref, xt_ref, xb_ref, o_ref):
    """One (batch, H-tile) step of conv3x3(pad=1) + PixelUnshuffle(2).

    wf_ref : (4, 4*Cin, 4*Cout)      folded weights, row-tap `ry` major
    xm_ref : (1, T, W/2+1, 2*Cin)    W-paired (W-padded) input rows of the tile
    xt_ref : (1, 1, W/2+1, 2*Cin)    row above the tile (clamped, masked i==0)
    xb_ref : (1, 1, W/2+1, 2*Cin)    row below the tile (clamped, masked last)
    o_ref  : (1, T/2, W/2, 4*Cout)   unshuffled conv output tile
    """
    i = pl.program_id(1)
    n_i = pl.num_programs(1)

    T = xm_ref.shape[1]
    W2 = o_ref.shape[2]
    C2 = xm_ref.shape[3]          # 2*Cin
    C4 = 2 * C2                   # 4*Cin
    T2 = T // 2
    N = o_ref.shape[3]            # 4*Cout

    body = xm_ref[0]                                            # (T, W2+1, 2Cin)
    # H halo rows: real neighbor rows inside the image, zeros at the borders.
    top = jnp.where(i > 0, xt_ref[0], jnp.zeros_like(xt_ref[0]))
    bot = jnp.where(i < n_i - 1, xb_ref[0], jnp.zeros_like(xb_ref[0]))
    # q[r, j, sx*Cin + ci] == x_padded[row0 + r, 2*j + sx, ci]
    q = jnp.concatenate([top, body, bot], axis=0)               # (T+2, W2+1, 2Cin)

    # r_[r, w2, rx*Cin + ci] == x_padded[row0 + r, 2*w2 + rx, ci],  rx in 0..3
    r_ = jnp.concatenate([q[:, 0:W2, :], q[:, 1:W2 + 1, :]], axis=2)  # (T+2, W2, 4Cin)
    s = r_.reshape(T2 + 1, 2, W2, C4)

    acc = jnp.zeros((T2 * W2, N), jnp.float32)
    for ry in range(4):           # 4 fat taps instead of 9 thin ones
        v, sy = divmod(ry, 2)
        m = s[v:v + T2, sy].reshape(T2 * W2, C4)                # leading-dim only
        acc = acc + jnp.dot(m, wf_ref[ry], preferred_element_type=jnp.float32)

    o_ref[0] = acc.reshape(T2, W2, N).astype(o_ref.dtype)


def _fold_weight(weight_oihw):
    """(Cout, Cin, 3, 3) OIHW -> (4, 4*Cin, 4*Cout) folded conv+unshuffle weight.

    wf[ry, rx*Cin + ci, co*4 + dy*2 + dx] = W[co, ci, ry-dy, rx-dx] when the tap
    is inside the 3x3 kernel, else 0.  A stride-2 "4x4" conv with this weight
    equals conv3x3(pad=1) followed by PixelUnshuffle(2) in PyTorch channel order.
    """
    Cout, Cin = weight_oihw.shape[0], weight_oihw.shape[1]
    w = jnp.transpose(weight_oihw, (2, 3, 1, 0))                # (ky, kx, ci, co)
    wf = jnp.zeros((4, 4, Cin, Cout, 2, 2), w.dtype)            # (ry, rx, ci, co, dy, dx)
    for dy in range(2):
        for dx in range(2):
            wf = wf.at[dy:dy + 3, dx:dx + 3, :, :, dy, dx].set(w)
    return wf.reshape(4, 4 * Cin, 4 * Cout)


def _pick_tile_h(H, W, Cin, itemsize, vmem_budget_bytes=4 * 1024 * 1024):
    """Largest even divisor of H whose input slab stays within the VMEM budget."""
    row_bytes = (W + 2) * Cin * itemsize
    cap = max(2, vmem_budget_bytes // max(row_bytes, 1))
    best = 2
    for t in range(2, H + 1, 2):
        if H % t == 0 and t <= cap:
            best = t
    return best


def downsample_forward(x_nchw, weight_oihw, *, tile_h=None, compute_dtype=None):
    """Downsample forward: (B, Cin, H, W) -> (B, 2*Cin, H//2, W//2), like PyTorch."""
    B, Cin, H, W = x_nchw.shape
    Cout = weight_oihw.shape[0]
    assert weight_oihw.shape == (Cout, Cin, 3, 3)
    assert H % 2 == 0 and W % 2 == 0, "PixelUnshuffle(2) needs even H, W"
    out_dtype = x_nchw.dtype
    if compute_dtype is None:
        compute_dtype = x_nchw.dtype
    H2, W2 = H // 2, W // 2

    if tile_h is None:
        tile_h = _pick_tile_h(H, W, Cin, jnp.dtype(compute_dtype).itemsize)
    assert tile_h % 2 == 0 and H % tile_h == 0
    T, T2 = tile_h, tile_h // 2
    n_th = H // T

    # Single fused layout pass (needed anyway for NCHW->NHWC): transpose +
    # 1-column W halo pad + column pairing.  No standalone full-array pad;
    # the H halo is handled inside the kernel.
    xt = jnp.transpose(x_nchw, (0, 2, 3, 1)).astype(compute_dtype)   # (B,H,W,Cin)
    xt = jnp.pad(xt, ((0, 0), (0, 0), (1, 1), (0, 0)))               # (B,H,W+2,Cin)
    xq = xt.reshape(B, H, W2 + 1, 2 * Cin)                           # paired cols

    wf = _fold_weight(weight_oihw).astype(compute_dtype)             # (4,4Cin,4Cout)
    itemsize = jnp.dtype(compute_dtype).itemsize

    out_nhwc = pl.pallas_call(
        _downsample_kernel,
        out_shape=jax.ShapeDtypeStruct((B, H2, W2, 4 * Cout), out_dtype),
        grid_spec=pltpu.PrefetchScalarGridSpec(
            num_scalar_prefetch=0,
            grid=(B, n_th),
            in_specs=[
                pl.BlockSpec((4, 4 * Cin, 4 * Cout), lambda b, i: (0, 0, 0)),
                pl.BlockSpec((1, T, W2 + 1, 2 * Cin),
                             lambda b, i: (b, i, 0, 0)),
                pl.BlockSpec((1, 1, W2 + 1, 2 * Cin),
                             lambda b, i: (b, jnp.maximum(i * T - 1, 0), 0, 0)),
                pl.BlockSpec((1, 1, W2 + 1, 2 * Cin),
                             lambda b, i: (b, jnp.minimum(i * T + T, H - 1), 0, 0)),
            ],
            out_specs=pl.BlockSpec((1, T2, W2, 4 * Cout),
                                   lambda b, i: (b, i, 0, 0)),
        ),
        compiler_params=pltpu.CompilerParams(
            dimension_semantics=("parallel", "parallel"),
            vmem_limit_bytes=32 * 1024 * 1024,
        ),
        cost_estimate=pl.CostEstimate(
            flops=2 * B * H2 * W2 * 4 * (4 * Cin) * (4 * Cout),
            transcendentals=0,
            bytes_accessed=(xq.size * itemsize + wf.size * itemsize
                            + B * H2 * W2 * 4 * Cout
                            * jnp.dtype(out_dtype).itemsize),
        ),
    )(wf, xq, xq, xq)

    # Kernel channel order is already co*4 + dy*2 + dx (PyTorch PixelUnshuffle
    # order), so a single NHWC->NCHW transpose finishes the op.
    return jnp.transpose(out_nhwc, (0, 3, 1, 2))


def _reference_forward(x_nchw, weight_oihw):
    """Pure-JAX reference (lax conv + explicit unshuffle) for correctness."""
    y = jax.lax.conv_general_dilated(
        x_nchw, weight_oihw,
        window_strides=(1, 1),
        padding=((1, 1), (1, 1)),
        dimension_numbers=("NCHW", "OIHW", "NCHW"),
    )
    B, C, Hc, Wc = y.shape
    y = y.reshape(B, C, Hc // 2, 2, Wc // 2, 2)
    y = jnp.transpose(y, (0, 1, 3, 5, 2, 4))
    return y.reshape(B, C * 4, Hc // 2, Wc // 2)


if __name__ == "__main__":
    B, n_feat, H, W = 2, 4, 16, 16
    key = jax.random.PRNGKey(0)
    k_x, k_w = jax.random.split(key)

    x = jax.random.normal(k_x, (B, n_feat, H, W), dtype=jnp.float32)
    # Conv2d(n_feat, n_feat//2, 3, bias=False) weight: (Cout, Cin, 3, 3).
    weight = 0.1 * jax.random.normal(
        k_w, (n_feat // 2, n_feat, 3, 3), dtype=jnp.float32)

    fwd = jax.jit(downsample_forward,
                  static_argnames=("tile_h", "compute_dtype"))

    ref = jax.block_until_ready(_reference_forward(x, weight))

    # f32, two H-tiles per image (exercises interior + border halo handling).
    out = jax.block_until_ready(fwd(x, weight, tile_h=8))
    assert out.shape == (B, 2 * n_feat, H // 2, W // 2), out.shape
    assert jnp.allclose(out, ref, atol=1e-4, rtol=1e-4), "f32/tiled mismatch"

    # f32, single H-tile per image.
    out1 = jax.block_until_ready(fwd(x, weight, tile_h=16))
    assert jnp.allclose(out1, ref, atol=1e-4, rtol=1e-4), "f32/full mismatch"

    # bf16 compute (half HBM traffic, faster MXU), f32 accumulation.
    outb = jax.block_until_ready(
        fwd(x, weight, tile_h=8, compute_dtype=jnp.bfloat16))
    assert outb.dtype == x.dtype
    assert jnp.allclose(outb, ref, atol=5e-2, rtol=5e-2), "bf16 mismatch"

    print("KERNEL_OK")
</pallas_src>

<mosaic_0001>
module attributes {stable_mosaic.version = 11 : i64} {
  func.func @_downsample_kernel(%arg0: i32, %arg1: i32, %arg2: memref<4x16x8xf32, #tpu.memory_space<vmem>>, %arg3: memref<1x8x9x8xf32, #tpu.memory_space<vmem>>, %arg4: memref<1x1x9x8xf32, #tpu.memory_space<vmem>>, %arg5: memref<1x1x9x8xf32, #tpu.memory_space<vmem>>, %arg6: memref<1x4x8x8xf32, #tpu.memory_space<vmem>>) attributes {dimension_semantics = [#tpu.dimension_semantics<parallel>, #tpu.dimension_semantics<parallel>], iteration_bounds = array<i64: 2, 2>, scalar_prefetch = 0 : i64, scratch_operands = 0 : i64, tpu.core_type = #tpu.core_type<tc>, window_params = [{pipeline_mode = #tpu.pipeline_mode<synchronous>, transform_indices = @transform_0, window_bounds = array<i64: 4, 16, 8>}, {transform_indices = @transform_1, window_bounds = array<i64: 1, 8, 9, 8>}, {transform_indices = @transform_2, window_bounds = array<i64: 1, 1, 9, 8>}, {transform_indices = @transform_3, window_bounds = array<i64: 1, 1, 9, 8>}, {transform_indices = @transform_4, window_bounds = array<i64: 1, 4, 8, 8>}]} {
    %c0 = arith.constant 0 : index
    %c0_0 = arith.constant 0 : index
    %c0_1 = arith.constant 0 : index
    %c0_2 = arith.constant 0 : index
    %0 = vector.load %arg3[%c0, %c0_0, %c0_1, %c0_2] : memref<1x8x9x8xf32, #tpu.memory_space<vmem>>, vector<1x8x9x8xf32>
    %1 = vector.shape_cast %0 : vector<1x8x9x8xf32> to vector<8x9x8xf32>
    %c0_i32 = arith.constant 0 : i32
    %2 = arith.cmpi sgt, %arg1, %c0_i32 : i32
    %c0_3 = arith.constant 0 : index
    %c0_4 = arith.constant 0 : index
    %c0_5 = arith.constant 0 : index
    %c0_6 = arith.constant 0 : index
    %3 = vector.load %arg4[%c0_3, %c0_4, %c0_5, %c0_6] : memref<1x1x9x8xf32, #tpu.memory_space<vmem>>, vector<1x1x9x8xf32>
    %4 = vector.shape_cast %3 : vector<1x1x9x8xf32> to vector<1x9x8xf32>
    %cst = arith.constant 0.000000e+00 : f32
    %5 = vector.broadcast %cst : f32 to vector<1x9x8xf32>
    %6 = arith.select %2, %4, %5 : vector<1x9x8xf32>
    %c1_i32 = arith.constant 1 : i32
    %7 = arith.cmpi slt, %arg1, %c1_i32 : i32
    %c0_7 = arith.constant 0 : index
    %c0_8 = arith.constant 0 : index
    %c0_9 = arith.constant 0 : index
    %c0_10 = arith.constant 0 : index
    %8 = vector.load %arg5[%c0_7, %c0_8, %c0_9, %c0_10] : memref<1x1x9x8xf32, #tpu.memory_space<vmem>>, vector<1x1x9x8xf32>
    %9 = vector.shape_cast %8 : vector<1x1x9x8xf32> to vector<1x9x8xf32>
    %cst_11 = arith.constant 0.000000e+00 : f32
    %10 = vector.broadcast %cst_11 : f32 to vector<1x9x8xf32>
    %11 = arith.select %7, %9, %10 : vector<1x9x8xf32>
    %12 = tpu.concatenate %6, %1, %11 in 0 : vector<1x9x8xf32>, vector<8x9x8xf32>, vector<1x9x8xf32> -> vector<10x9x8xf32>
    %13 = vector.extract_strided_slice %12 {offsets = [0, 0, 0], sizes = [10, 8, 8], strides = [1, 1, 1]} : vector<10x9x8xf32> to vector<10x8x8xf32>
    %14 = vector.extract_strided_slice %12 {offsets = [0, 1, 0], sizes = [10, 8, 8], strides = [1, 1, 1]} : vector<10x9x8xf32> to vector<10x8x8xf32>
    %15 = tpu.concatenate %13, %14 in 2 : vector<10x8x8xf32>, vector<10x8x8xf32> -> vector<10x8x16xf32>
    %16 = vector.shape_cast %15 : vector<10x8x16xf32> to vector<5x2x8x16xf32>
    %cst_12 = arith.constant 0.000000e+00 : f32
    %17 = vector.broadcast %cst_12 : f32 to vector<32x8xf32>
    %18 = vector.extract_strided_slice %16 {offsets = [0, 0, 0, 0], sizes = [4, 1, 8, 16], strides = [1, 1, 1, 1]} : vector<5x2x8x16xf32> to vector<4x1x8x16xf32>
    %19 = vector.shape_cast %18 : vector<4x1x8x16xf32> to vector<4x8x16xf32>
    %20 = vector.shape_cast %19 : vector<4x8x16xf32> to vector<32x16xf32>
    %c0_13 = arith.constant 0 : index
    %c0_14 = arith.constant 0 : index
    %c0_15 = arith.constant 0 : index
    %21 = vector.load %arg2[%c0_13, %c0_14, %c0_15] : memref<4x16x8xf32, #tpu.memory_space<vmem>>, vector<1x16x8xf32>
    %22 = vector.shape_cast %21 : vector<1x16x8xf32> to vector<16x8xf32>
    %cst_16 = arith.constant dense<0.000000e+00> : vector<32x8xf32>
    %23 = tpu.matmul %20, %22, %cst_16 {dimension_numbers = #tpu.dot_dimension_numbers<[1], [0], [0], [1], [0, 0, 1, 1], [], []>} : vector<32x16xf32>, vector<16x8xf32>, vector<32x8xf32> -> vector<32x8xf32>
    %24 = arith.addf %17, %23 : vector<32x8xf32>
    %25 = vector.extract_strided_slice %16 {offsets = [0, 1, 0, 0], sizes = [4, 1, 8, 16], strides = [1, 1, 1, 1]} : vector<5x2x8x16xf32> to vector<4x1x8x16xf32>
    %26 = vector.shape_cast %25 : vector<4x1x8x16xf32> to vector<4x8x16xf32>
    %27 = vector.shape_cast %26 : vector<4x8x16xf32> to vector<32x16xf32>
    %c1 = arith.constant 1 : index
    %c0_17 = arith.constant 0 : index
    %c0_18 = arith.constant 0 : index
    %28 = vector.load %arg2[%c1, %c0_17, %c0_18] : memref<4x16x8xf32, #tpu.memory_space<vmem>>, vector<1x16x8xf32>
    %29 = vector.shape_cast %28 : vector<1x16x8xf32> to vector<16x8xf32>
    %cst_19 = arith.constant dense<0.000000e+00> : vector<32x8xf32>
    %30 = tpu.matmul %27, %29, %cst_19 {dimension_numbers = #tpu.dot_dimension_numbers<[1], [0], [0], [1], [0, 0, 1, 1], [], []>} : vector<32x16xf32>, vector<16x8xf32>, vector<32x8xf32> -> vector<32x8xf32>
    %31 = arith.addf %24, %30 : vector<32x8xf32>
    %32 = vector.extract_strided_slice %16 {offsets = [1, 0, 0, 0], sizes = [4, 1, 8, 16], strides = [1, 1, 1, 1]} : vector<5x2x8x16xf32> to vector<4x1x8x16xf32>
    %33 = vector.shape_cast %32 : vector<4x1x8x16xf32> to vector<4x8x16xf32>
    %34 = vector.shape_cast %33 : vector<4x8x16xf32> to vector<32x16xf32>
    %c2 = arith.constant 2 : index
    %c0_20 = arith.constant 0 : index
    %c0_21 = arith.constant 0 : index
    %35 = vector.load %arg2[%c2, %c0_20, %c0_21] : memref<4x16x8xf32, #tpu.memory_space<vmem>>, vector<1x16x8xf32>
    %36 = vector.shape_cast %35 : vector<1x16x8xf32> to vector<16x8xf32>
    %cst_22 = arith.constant dense<0.000000e+00> : vector<32x8xf32>
    %37 = tpu.matmul %34, %36, %cst_22 {dimension_numbers = #tpu.dot_dimension_numbers<[1], [0], [0], [1], [0, 0, 1, 1], [], []>} : vector<32x16xf32>, vector<16x8xf32>, vector<32x8xf32> -> vector<32x8xf32>
    %38 = arith.addf %31, %37 : vector<32x8xf32>
    %39 = vector.extract_strided_slice %16 {offsets = [1, 1, 0, 0], sizes = [4, 1, 8, 16], strides = [1, 1, 1, 1]} : vector<5x2x8x16xf32> to vector<4x1x8x16xf32>
    %40 = vector.shape_cast %39 : vector<4x1x8x16xf32> to vector<4x8x16xf32>
    %41 = vector.shape_cast %40 : vector<4x8x16xf32> to vector<32x16xf32>
    %c3 = arith.constant 3 : index
    %c0_23 = arith.constant 0 : index
    %c0_24 = arith.constant 0 : index
    %42 = vector.load %arg2[%c3, %c0_23, %c0_24] : memref<4x16x8xf32, #tpu.memory_space<vmem>>, vector<1x16x8xf32>
    %43 = vector.shape_cast %42 : vector<1x16x8xf32> to vector<16x8xf32>
    %cst_25 = arith.constant dense<0.000000e+00> : vector<32x8xf32>
    %44 = tpu.matmul %41, %43, %cst_25 {dimension_numbers = #tpu.dot_dimension_numbers<[1], [0], [0], [1], [0, 0, 1, 1], [], []>} : vector<32x16xf32>, vector<16x8xf32>, vector<32x8xf32> -> vector<32x8xf32>
    %45 = arith.addf %38, %44 : vector<32x8xf32>
    %46 = vector.shape_cast %45 : vector<32x8xf32> to vector<4x8x8xf32>
    %c0_26 = arith.constant 0 : index
    %c0_27 = arith.constant 0 : index
    %c0_28 = arith.constant 0 : index
    %c0_29 = arith.constant 0 : index
    %47 = vector.load %arg6[%c0_26, %c0_27, %c0_28, %c0_29] : memref<1x4x8x8xf32, #tpu.memory_space<vmem>>, vector<1x4x8x8xf32>
    %48 = vector.shape_cast %47 : vector<1x4x8x8xf32> to vector<4x8x8xf32>
    %49 = vector.shape_cast %46 : vector<4x8x8xf32> to vector<1x4x8x8xf32>
    tpu.vector_store %arg6[%c0_26, %c0_27, %c0_28, %c0_29], %49 {strides = array<i32>} : memref<1x4x8x8xf32, #tpu.memory_space<vmem>>, vector<1x4x8x8xf32>,
    return
  }
  func.func @transform_0(%arg0: i32, %arg1: i32) -> (i32, i32, i32) {
    %c0_i32 = arith.constant 0 : i32
    %c0_i32_0 = arith.constant 0 : i32
    %c0_i32_1 = arith.constant 0 : i32
    %c0_i32_2 = arith.constant 0 : i32
    return %c0_i32, %c0_i32_0, %c0_i32_1 : i32, i32, i32
  }
  func.func @transform_1(%arg0: i32, %arg1: i32) -> (i32, i32, i32, i32) {
    %c0_i32 = arith.constant 0 : i32
    %c0_i32_0 = arith.constant 0 : i32
    %c0_i32_1 = arith.constant 0 : i32
    return %arg0, %arg1, %c0_i32, %c0_i32_0 : i32, i32, i32, i32
  }
  func.func @transform_2(%arg0: i32, %arg1: i32) -> (i32, i32, i32, i32) {
    %c8_i32 = arith.constant 8 : i32
    %0 = arith.muli %arg1, %c8_i32 : i32
    %c1_i32 = arith.constant 1 : i32
    %1 = arith.subi %0, %c1_i32 : i32
    %c0_i32 = arith.constant 0 : i32
    %2 = arith.maxsi %1, %c0_i32 : i32
    %c0_i32_0 = arith.constant 0 : i32
    %c0_i32_1 = arith.constant 0 : i32
    %c0_i32_2 = arith.constant 0 : i32
    return %arg0, %2, %c0_i32_0, %c0_i32_1 : i32, i32, i32, i32
  }
  func.func @transform_3(%arg0: i32, %arg1: i32) -> (i32, i32, i32, i32) {
    %c8_i32 = arith.constant 8 : i32
    %0 = arith.muli %arg1, %c8_i32 : i32
    %c8_i32_0 = arith.constant 8 : i32
    %1 = arith.addi %0, %c8_i32_0 : i32
    %c15_i32 = arith.constant 15 : i32
    %2 = arith.minsi %1, %c15_i32 : i32
    %c0_i32 = arith.constant 0 : i32
    %c0_i32_1 = arith.constant 0 : i32
    %c0_i32_2 = arith.constant 0 : i32
    return %arg0, %2, %c0_i32, %c0_i32_1 : i32, i32, i32, i32
  }
  func.func @transform_4(%arg0: i32, %arg1: i32) -> (i32, i32, i32, i32) {
    %c0_i32 = arith.constant 0 : i32
    %c0_i32_0 = arith.constant 0 : i32
    %c0_i32_1 = arith.constant 0 : i32
    return %arg0, %arg1, %c0_i32, %c0_i32_0 : i32, i32, i32, i32
  }
}

</mosaic_0001>

<llo_original>
// kernel: downsample_forward.1
$region0: #{downsample_forward.1}
  #allocation0 [shape = 'u32[]', space=smem, size = 0x4, offset = 0x4, fixed_abs, tag = 'smem constant byte address 0x4 - core index']
  #allocation1 [shape = 'u32[144,128]{1,0:T(1,128)}', space=vmem, size = 0x12000, scoped, tag = 'internal scratch']
  %s0 = inlined_call_operand.vmem [shape: f32[4,16,8], index: 0, kind: input, shape index: {}]
  %s1 = inlined_call_operand.vmem [shape: f32[2,16,9,8], index: 1, kind: input, shape index: {}, may-alias: {1,2,3}]
  %s2 = inlined_call_operand.vmem [shape: f32[2,16,9,8], index: 2, kind: input, shape index: {}, may-alias: {1,2,3}]
  %s3 = inlined_call_operand.vmem [shape: f32[2,16,9,8], index: 3, kind: input, shape index: {}, may-alias: {1,2,3}]
  %s4 = inlined_call_operand.vmem [shape: f32[2,8,8,8], index: 4, kind: output, shape index: {}]
  %s5 = sld [smem:[#allocation0]]
  $region49: #{downsample_forward.1} parent=0
    _
  %s7 = ssub.s32 1, %s5
  %s8 = scalar_select 0, %s7, %s5
  loop: start=0, step=1, limit=6
  $region2: #{downsample_forward.1} parent=0 // loop_pre_header
    _
  $region3: #{downsample_forward.1} parent=0 // loop_header
    %s10 = sphi 0, %s14
    %p11 = scmp.ge.s32.totalorder %s10, 6
    %s17 = sphi 0, %s29
    %s18 = sphi 0, %s25
    %s19 = sphi 0, %s17
    %s20 = sphi 0, %s18
    %s21 = sphi 0, %s19
    %s22 = sphi 0, %s20
    %s30 = sphi 0, %s30
    %s32 = sphi 0, %s30
    %s33 = sphi 0, %s32
    %s47 = sphi 0, %s33
    %s55 = sphi 0, %s57
    %s58 = sphi 0, %s55
    %s59 = sphi 0, %s58
    %s75 = sphi 0, %s59
    %s91 = sphi 0, %s93
    %s94 = sphi 0, %s91
    %s95 = sphi 0, %s94
    %s111 = sphi 0, %s95
    %s127 = sphi 0, %s129
    %s130 = sphi 0, %s127
    %s131 = sphi 0, %s130
    %s147 = sphi 0, %s131
    %s155 = sphi 0, %s157
    %s158 = sphi 0, %s155
    %s159 = sphi 0, %s158
    %s175 = sphi 0, %s159
  $region4: #{downsample_forward.1} parent=0 // loop_header_branch
    %13 = sbr.rel (%p11) target = $region8
  $region5: #{downsample_forward.1} parent=0 // loop_body
    %s15 = ssub.s32 %s10, 1
    %s16 = ssub.s32 %s10, 2
    %s23 = sadd.s32 1, %s18
    %p24 = scmp.ge.s32.totalorder %s23, 2
    %s25 = scalar_select %p24, 0, %s23
    %s26 = sadd.s32 1, %s17
    %s27 = scalar_select %p24, %s26, %s17
    %p28 = scmp.ge.s32.totalorder %s27, 2
    %s29 = scalar_select %p28, 0, %s27
    %s31 = sadd.s32 %s30, 1
    %p34 = scmp.eq.s32.totalorder %s10, 3
    %p35 = scmp.ne.s32.totalorder %s30, %s32
    %p36 = scmp.eq.s32.totalorder %s10, 0
    %p37 = por %p35, %p36
    %p38 = scmp.ne.s32.totalorder %s30, %s32
    %p39 = scmp.eq.s32.totalorder %s15, 3
    %p40 = por %p38, %p39
    %p41 = scmp.ne.s32.totalorder %s32, %s33
    %p42 = scmp.eq.s32.totalorder %s15, 0
    %p43 = por %p41, %p42
    %p44 = scmp.ne.s32.totalorder %s32, %s33
    %p45 = scmp.eq.s32.totalorder %s16, 3
    %p46 = por %p44, %p45
    %p48 = scmp.ne.s32.totalorder %s33, %s47
    %p49 = scmp.eq.s32.totalorder %s16, 0
    %p50 = por %p48, %p49
    %s51 = ssub.s32 %s17, %s29
    %s52 = ssub.s32 %s18, %s25
    %s53 = sor.u32 %s51, %s52
    %p54 = scmp.eq.s32.totalorder %s53, 0
    %s56 = sadd.s32 %s55, 1
    %s57 = scalar_select %p54, %s55, %s56
    %p60 = pneg %p54
    %p61 = scmp.eq.s32.totalorder %s10, 3
    %p62 = por %p60, %p61
    %p63 = scmp.ne.s32.totalorder %s55, %s58
    %p64 = scmp.eq.s32.totalorder %s10, 0
    %p65 = por %p63, %p64
    %p66 = scmp.ne.s32.totalorder %s55, %s58
    %p67 = scmp.eq.s32.totalorder %s15, 3
    %p68 = por %p66, %p67
    %p69 = scmp.ne.s32.totalorder %s58, %s59
    %p70 = scmp.eq.s32.totalorder %s15, 0
    %p71 = por %p69, %p70
    %p72 = scmp.ne.s32.totalorder %s58, %s59
    %p73 = scmp.eq.s32.totalorder %s16, 3
    %p74 = por %p72, %p73
    %p76 = scmp.ne.s32.totalorder %s59, %s75
    %p77 = scmp.eq.s32.totalorder %s16, 0
    %p78 = por %p76, %p77
    %s79 = smul.u32 %s18, 8
    %s80 = ssub.s32 %s79, 1
    %p81 = scmp.gt.s32.totalorder %s80, 0
    %s82 = scalar_select %p81, %s80, 0
    %s83 = smul.u32 %s25, 8
    %s84 = ssub.s32 %s83, 1
    %p85 = scmp.gt.s32.totalorder %s84, 0
    %s86 = scalar_select %p85, %s84, 0
    %s87 = ssub.s32 %s17, %s29
    %s88 = ssub.s32 %s82, %s86
    %s89 = sor.u32 %s87, %s88
    %p90 = scmp.eq.s32.totalorder %s89, 0
    %s92 = sadd.s32 %s91, 1
    %s93 = scalar_select %p90, %s91, %s92
    %p96 = pneg %p90
    %p97 = scmp.eq.s32.totalorder %s10, 3
    %p98 = por %p96, %p97
    %p99 = scmp.ne.s32.totalorder %s91, %s94
    %p100 = scmp.eq.s32.totalorder %s10, 0
    %p101 = por %p99, %p100
    %p102 = scmp.ne.s32.totalorder %s91, %s94
    %p103 = scmp.eq.s32.totalorder %s15, 3
    %p104 = por %p102, %p103
    %p105 = scmp.ne.s32.totalorder %s94, %s95
    %p106 = scmp.eq.s32.totalorder %s15, 0
    %p107 = por %p105, %p106
    %p108 = scmp.ne.s32.totalorder %s94, %s95
    %p109 = scmp.eq.s32.totalorder %s16, 3
    %p110 = por %p108, %p109
    %p112 = scmp.ne.s32.totalorder %s95, %s111
    %p113 = scmp.eq.s32.totalorder %s16, 0
    %p114 = por %p112, %p113
    %s115 = smul.u32 %s18, 8
    %s116 = sadd.s32 %s115, 8
    %p117 = scmp.lt.s32.totalorder %s116, 15
    %s118 = scalar_select %p117, %s116, 15
    %s119 = smul.u32 %s25, 8
    %s120 = sadd.s32 %s119, 8
    %p121 = scmp.lt.s32.totalorder %s120, 15
    %s122 = scalar_select %p121, %s120, 15
    %s123 = ssub.s32 %s17, %s29
    %s124 = ssub.s32 %s118, %s122
    %s125 = sor.u32 %s123, %s124
    %p126 = scmp.eq.s32.totalorder %s125, 0
    %s128 = sadd.s32 %s127, 1
    %s129 = scalar_select %p126, %s127, %s128
    %p132 = pneg %p126
    %p133 = scmp.eq.s32.totalorder %s10, 3
    %p134 = por %p132, %p133
    %p135 = scmp.ne.s32.totalorder %s127, %s130
    %p136 = scmp.eq.s32.totalorder %s10, 0
    %p137 = por %p135, %p136
    %p138 = scmp.ne.s32.totalorder %s127, %s130
    %p139 = scmp.eq.s32.totalorder %s15, 3
    %p140 = por %p138, %p139
    %p141 = scmp.ne.s32.totalorder %s130, %s131
    %p142 = scmp.eq.s32.totalorder %s15, 0
    %p143 = por %p141, %p142
    %p144 = scmp.ne.s32.totalorder %s130, %s131
    %p145 = scmp.eq.s32.totalorder %s16, 3
    %p146 = por %p144, %p145
    %p148 = scmp.ne.s32.totalorder %s131, %s147
    %p149 = scmp.eq.s32.totalorder %s16, 0
    %p150 = por %p148, %p149
    %s151 = ssub.s32 %s17, %s29
    %s152 = ssub.s32 %s18, %s25
    %s153 = sor.u32 %s151, %s152
    %p154 = scmp.eq.s32.totalorder %s153, 0
    %s156 = sadd.s32 %s155, 1
    %s157 = scalar_select %p154, %s155, %s156
    %p160 = pneg %p154
    %p161 = scmp.eq.s32.totalorder %s10, 3
    %p162 = por %p160, %p161
    %p163 = scmp.ne.s32.totalorder %s155, %s158
    %p164 = scmp.eq.s32.totalorder %s10, 0
    %p165 = por %p163, %p164
    %p166 = scmp.ne.s32.totalorder %s155, %s158
    %p167 = scmp.eq.s32.totalorder %s15, 3
    %p168 = por %p166, %p167
    %p169 = scmp.ne.s32.totalorder %s158, %s159
    %p170 = scmp.eq.s32.totalorder %s15, 0
    %p171 = por %p169, %p170
    %p172 = scmp.ne.s32.totalorder %s158, %s159
    %p173 = scmp.eq.s32.totalorder %s16, 3
    %p174 = por %p172, %p173
    %p176 = scmp.ne.s32.totalorder %s159, %s175
    %p177 = scmp.eq.s32.totalorder %s16, 0
    %p178 = por %p176, %p177
    %p179 = scmp.le.s32.totalorder 1, %s10
    %p180 = scmp.lt.s32.totalorder %s10, 5
    %p181 = pnand %p179, %p180
    %p182 = pneg %p181
    // Predicated region
    $region9: #{downsample_forward.1} parent=5 // pred_check
      _
    $region10: #{downsample_forward.1} parent=5 // pred_check_branch
      %184 = sbr.rel (%p181) target = $region12
    $region11: #{downsample_forward.1} parent=5 // pred_region
      %s185 = ssub.s32 %s10, 1
      // Predicated region
      $region13: #{downsample_forward.1} parent=11 // pred_check
        %p186 = pneg %p43
      $region14: #{downsample_forward.1} parent=11 // pred_check_branch
        %188 = sbr.rel (%p186) target = $region16
      $region15: #{downsample_forward.1} parent=11 // pred_region
        _
      $region16: #{downsample_forward.1} parent=11 // pred_fallthru
        _
    $region12: #{downsample_forward.1} parent=5 // pred_fallthru
      _
    %p189 = scmp.lt.s32.totalorder %s10, 4
    // Predicated region
    $region17: #{downsample_forward.1} parent=5 // pred_check
      %p190 = pneg %p189
    $region18: #{downsample_forward.1} parent=5 // pred_check_branch
      %192 = sbr.rel (%p190) target = $region20
    $region19: #{downsample_forward.1} parent=5 // pred_region
      // Predicated region
      $region21: #{downsample_forward.1} parent=19 // pred_check
        %p193 = pneg %p65
      $region22: #{downsample_forward.1} parent=19 // pred_check_branch
        %195 = sbr.rel (%p193) target = $region24
      $region23: #{downsample_forward.1} parent=19 // pred_region
        %s196 = smul.u32 8, %s18
        %p197 = scmp.lt.s32.totalorder %s17, 1
        %s198 = scalar_select %p197, %s17, 1
        %p199 = scmp.lt.s32.totalorder %s196, 15
        %s200 = scalar_select %p199, %s196, 15
        %s201 = smul.addr %s200, 2
        %s202 = smul.addr %s198, 32
        %s203 = sadd.s32 %s201, %s202
        %s204 = smul.addr %s203, 8
        %s205 = scalar_lea.vmem %s1, %s204
        %s206 = smul.u32 8, %s18
      $region24: #{downsample_forward.1} parent=19 // pred_fallthru
        _
      // Predicated region
      $region25: #{downsample_forward.1} parent=19 // pred_check
        %p207 = pneg %p101
      $region26: #{downsample_forward.1} parent=19 // pred_check_branch
        %209 = sbr.rel (%p207) target = $region28
      $region27: #{downsample_forward.1} parent=19 // pred_region
        %s210 = smul.u32 %s18, 8
        %s211 = ssub.s32 %s210, 1
        %p212 = scmp.gt.s32.totalorder %s211, 0
        %s213 = scalar_select %p212, %s211, 0
        %p214 = scmp.lt.s32.totalorder %s17, 1
        %s215 = scalar_select %p214, %s17, 1
        %p216 = scmp.lt.s32.totalorder %s213, 15
        %s217 = scalar_select %p216, %s213, 15
        %s218 = smul.addr %s217, 2
        %s219 = smul.addr %s215, 32
        %s220 = sadd.s32 %s218, %s219
        %s221 = smul.addr %s220, 8
        %s222 = scalar_lea.vmem %s2, %s221
        %s223 = smul.u32 %s18, 8
        %s224 = ssub.s32 %s223, 1
        %p225 = scmp.gt.s32.totalorder %s224, 0
        %s226 = scalar_select %p225, %s224, 0
      $region28: #{downsample_forward.1} parent=19 // pred_fallthru
        _
      // Predicated region
      $region29: #{downsample_forward.1} parent=19 // pred_check
        %p227 = pneg %p137
      $region30: #{downsample_forward.1} parent=19 // pred_check_branch
        %229 = sbr.rel (%p227) target = $region32
      $region31: #{downsample_forward.1} parent=19 // pred_region
        %s230 = smul.u32 %s18, 8
        %s231 = sadd.s32 %s230, 8
        %p232 = scmp.lt.s32.totalorder %s231, 15
        %s233 = scalar_select %p232, %s231, 15
        %p234 = scmp.lt.s32.totalorder %s17, 1
        %s235 = scalar_select %p234, %s17, 1
        %p236 = scmp.lt.s32.totalorder %s233, 15
        %s237 = scalar_select %p236, %s233, 15
        %s238 = smul.addr %s237, 2
        %s239 = smul.addr %s235, 32
        %s240 = sadd.s32 %s238, %s239
        %s241 = smul.addr %s240, 8
        %s242 = scalar_lea.vmem %s3, %s241
        %s243 = smul.u32 %s18, 8
        %s244 = sadd.s32 %s243, 8
        %p245 = scmp.lt.s32.totalorder %s244, 15
        %s246 = scalar_select %p245, %s244, 15
      $region32: #{downsample_forward.1} parent=19 // pred_fallthru
        _
    $region20: #{downsample_forward.1} parent=5 // pred_fallthru
      _
    %p247 = scmp.le.s32.totalorder 1, %s10
    %p248 = scmp.lt.s32.totalorder %s10, 5
    %p249 = pnand %p247, %p248
    %p250 = pneg %p249
    // Predicated region
    $region33: #{downsample_forward.1} parent=5 // pred_check
      _
    $region34: #{downsample_forward.1} parent=5 // pred_check_branch
      %252 = sbr.rel (%p249) target = $region36
    $region35: #{downsample_forward.1} parent=5 // pred_region
      %s253 = ssub.s32 %s10, 1
      %p254 = pneg %p43
      %p255 = pneg %p40
      %s256 = smul.u32 8, %s20
      %p257 = scmp.lt.s32.totalorder %s19, 1
      %s258 = scalar_select %p257, %s19, 1
      %p259 = scmp.lt.s32.totalorder %s256, 15
      %s260 = scalar_select %p259, %s256, 15
      %s261 = smul.addr %s260, 2
      %s262 = smul.addr %s258, 32
      %s263 = sadd.s32 %s261, %s262
      %s264 = smul.addr %s263, 8
      %s265 = scalar_lea.vmem %s1, %s264
      %p266 = pneg %p71
      %p267 = pneg %p68
      %s268 = smul.u32 %s20, 8
      %s269 = ssub.s32 %s268, 1
      %p270 = scmp.gt.s32.totalorder %s269, 0
      %s271 = scalar_select %p270, %s269, 0
      %p272 = scmp.lt.s32.totalorder %s19, 1
      %s273 = scalar_select %p272, %s19, 1
      %p274 = scmp.lt.s32.totalorder %s271, 15
      %s275 = scalar_select %p274, %s271, 15
      %s276 = smul.addr %s275, 2
      %s277 = smul.addr %s273, 32
      %s278 = sadd.s32 %s276, %s277
      %s279 = smul.addr %s278, 8
      %s280 = scalar_lea.vmem %s2, %s279
      %p281 = pneg %p107
      %p282 = pneg %p104
      %s283 = smul.u32 %s20, 8
      %s284 = sadd.s32 %s283, 8
      %p285 = scmp.lt.s32.totalorder %s284, 15
      %s286 = scalar_select %p285, %s284, 15
      %p287 = scmp.lt.s32.totalorder %s19, 1
      %s288 = scalar_select %p287, %s19, 1
      %p289 = scmp.lt.s32.totalorder %s286, 15
      %s290 = scalar_select %p289, %s286, 15
      %s291 = smul.addr %s290, 2
      %s292 = smul.addr %s288, 32
      %s293 = sadd.s32 %s291, %s292
      %s294 = smul.addr %s293, 8
      %s295 = scalar_lea.vmem %s3, %s294
      %p296 = pneg %p143
      %p297 = pneg %p140
      %p298 = pneg %p171
      %p299 = pneg %p168
      %s300 = smul.u32 4, %s20
      %p301 = scmp.lt.s32.totalorder %s19, 1
      %s302 = scalar_select %p301, %s19, 1
      %p303 = scmp.lt.s32.totalorder %s300, 7
      %s304 = scalar_select %p303, %s300, 7
      %s305 = smul.addr %s302, 8
      %s306 = sadd.s32 %s304, %s305
      %s307 = smul.addr %s306, 8
      %s308 = scalar_lea.vmem %s4, %s307
      %s309 = smul.u32 8, %s20
      %p310 = scmp.lt.s32.totalorder %s19, 1
      %s311 = scalar_select %p310, %s19, 1
      %p312 = scmp.lt.s32.totalorder %s309, 15
      %s313 = scalar_select %p312, %s309, 15
      %s314 = smul.addr %s313, 2
      %s315 = smul.addr %s311, 32
      %s316 = sadd.s32 %s314, %s315
      %s317 = smul.addr %s316, 8
      %s318 = scalar_lea.vmem %s1, %s317
      %s319 = smul.u32 8, %s20
      %s320 = smul.u32 %s20, 8
      %s321 = ssub.s32 %s320, 1
      %p322 = scmp.gt.s32.totalorder %s321, 0
      %s323 = scalar_select %p322, %s321, 0
      %p324 = scmp.lt.s32.totalorder %s19, 1
      %s325 = scalar_select %p324, %s19, 1
      %p326 = scmp.lt.s32.totalorder %s323, 15
      %s327 = scalar_select %p326, %s323, 15
      %s328 = smul.addr %s327, 2
      %s329 = smul.addr %s325, 32
      %s330 = sadd.s32 %s328, %s329
      %s331 = smul.addr %s330, 8
      %s332 = scalar_lea.vmem %s2, %s331
      %s333 = smul.u32 %s20, 8
      %s334 = ssub.s32 %s333, 1
      %p335 = scmp.gt.s32.totalorder %s334, 0
      %s336 = scalar_select %p335, %s334, 0
      %s337 = smul.u32 %s20, 8
      %s338 = sadd.s32 %s337, 8
      %p339 = scmp.lt.s32.totalorder %s338, 15
      %s340 = scalar_select %p339, %s338, 15
      %p341 = scmp.lt.s32.totalorder %s19, 1
      %s342 = scalar_select %p341, %s19, 1
      %p343 = scmp.lt.s32.totalorder %s340, 15
      %s344 = scalar_select %p343, %s340, 15
      %s345 = smul.addr %s344, 2
      %s346 = smul.addr %s342, 32
      %s347 = sadd.s32 %s345, %s346
      %s348 = smul.addr %s347, 8
      %s349 = scalar_lea.vmem %s3, %s348
      %s350 = smul.u32 %s20, 8
      %s351 = sadd.s32 %s350, 8
      %p352 = scmp.lt.s32.totalorder %s351, 15
      %s353 = scalar_select %p352, %s351, 15
      %s354 = smul.u32 4, %s20
      %p355 = scmp.lt.s32.totalorder %s19, 1
      %s356 = scalar_select %p355, %s19, 1
      %p357 = scmp.lt.s32.totalorder %s354, 7
      %s358 = scalar_select %p357, %s354, 7
      %s359 = smul.addr %s356, 8
      %s360 = sadd.s32 %s358, %s359
      %s361 = smul.addr %s360, 8
      %s362 = scalar_lea.vmem %s4, %s361
      %s363 = smul.u32 4, %s20
      %v364 = vld [vmem:[%s318] sm:$0xff]
      %v365 = vld [vmem:[%s318 + $0x8] sm:$0x1]
      %v366 = vld [vmem:[%s318 + $0x10] sm:$0xff]
      %v367 = vld [vmem:[%s318 + $0x18] sm:$0x1]
      %v368 = vld [vmem:[%s318 + $0x20] sm:$0xff]
      %v369 = vld [vmem:[%s318 + $0x28] sm:$0x1]
      %v370 = vld [vmem:[%s318 + $0x30] sm:$0xff]
      %v371 = vld [vmem:[%s318 + $0x38] sm:$0x1]
      %v372 = vld [vmem:[%s318 + $0x40] sm:$0xff]
      %v373 = vld [vmem:[%s318 + $0x48] sm:$0x1]
      %v374 = vld [vmem:[%s318 + $0x50] sm:$0xff]
      %v375 = vld [vmem:[%s318 + $0x58] sm:$0x1]
      %v376 = vld [vmem:[%s318 + $0x60] sm:$0xff]
      %v377 = vld [vmem:[%s318 + $0x68] sm:$0x1]
      %v378 = vld [vmem:[%s318 + $0x70] sm:$0xff]
      %v379 = vld [vmem:[%s318 + $0x78] sm:$0x1]
      %p380 = scmp.gt.s32.totalorder %s20, 0
      %v381 = vld [vmem:[%s332] sm:$0xff]
      %v382 = vld [vmem:[%s332 + $0x8] sm:$0x1]
      %s383 = scalar_select %p380, 1, 0
      %v384 = vstv %s383
      %vm385 = vcmp.eq.s32.totalorder %v384, 1
      %v386 = vsel %vm385, %v381, 0.0
      %v387 = vsel %vm385, %v382, 0.0
      %p388 = scmp.lt.s32.totalorder %s20, 1
      %v389 = vld [vmem:[%s349] sm:$0xff]
      %v390 = vld [vmem:[%s349 + $0x8] sm:$0x1]
      %s391 = scalar_select %p388, 1, 0
      %v392 = vstv %s391
      %vm393 = vcmp.eq.s32.totalorder %v392, 1
      %v394 = vsel %vm393, %v389, 0.0
      %v395 = vsel %vm393, %v390, 0.0
      %vm416 = vcmask 1046528
      %v417 = vrot.slane %v386, 1
      %v418 = vrot.slane %v387, 1
      %v419 = vsel %vm416, %v417, %v418
      %v420 = vrot.slane %v364, 1
      %v421 = vrot.slane %v365, 1
      %v422 = vsel %vm416, %v420, %v421
      %v423 = vrot.slane %v366, 1
      %v424 = vrot.slane %v367, 1
      %v425 = vsel %vm416, %v423, %v424
      %v426 = vrot.slane %v368, 1
      %v427 = vrot.slane %v369, 1
      %v428 = vsel %vm416, %v426, %v427
      %v429 = vrot.slane %v370, 1
      %v430 = vrot.slane %v371, 1
      %v431 = vsel %vm416, %v429, %v430
      %v432 = vrot.slane %v372, 1
      %v433 = vrot.slane %v373, 1
      %v434 = vsel %vm416, %v432, %v433
      %v435 = vrot.slane %v374, 1
      %v436 = vrot.slane %v375, 1
      %v437 = vsel %vm416, %v435, %v436
      %v438 = vrot.slane %v376, 1
      %v439 = vrot.slane %v377, 1
      %v440 = vsel %vm416, %v438, %v439
      %v441 = vrot.slane %v378, 1
      %v442 = vrot.slane %v379, 1
      %v443 = vsel %vm416, %v441, %v442
      %v444 = vrot.slane %v394, 1
      %v445 = vrot.slane %v395, 1
      %v446 = vsel %vm416, %v444, %v445
      %447 = vrot.lane.b32.xlu0 %v419, 8
      %v448 = vpop.permute.xlu0 %447
      %449 = vrot.lane.b32.xlu0 %v422, 8
      %v450 = vpop.permute.xlu0 %449
      %451 = vrot.lane.b32.xlu0 %v425, 8
      %v452 = vpop.permute.xlu0 %451
      %453 = vrot.lane.b32.xlu0 %v428, 8
      %v454 = vpop.permute.xlu0 %453
      %455 = vrot.lane.b32.xlu0 %v431, 8
      %v456 = vpop.permute.xlu0 %455
      %457 = vrot.lane.b32.xlu0 %v434, 8
      %v458 = vpop.permute.xlu0 %457
      %459 = vrot.lane.b32.xlu0 %v437, 8
      %v460 = vpop.permute.xlu0 %459
      %461 = vrot.lane.b32.xlu0 %v440, 8
      %v462 = vpop.permute.xlu0 %461
      %463 = vrot.lane.b32.xlu0 %v443, 8
      %v464 = vpop.permute.xlu0 %463
      %465 = vrot.lane.b32.xlu0 %v446, 8
      %v466 = vpop.permute.xlu0 %465
      %vm477 = vcmask 64512
      %v478 = vsel %vm477, %v386, %v448
      %v479 = vsel %vm477, %v364, %v450
      %v480 = vsel %vm477, %v366, %v452
      %v481 = vsel %vm477, %v368, %v454
      %v482 = vsel %vm477, %v370, %v456
      %v483 = vsel %vm477, %v372, %v458
      %v484 = vsel %vm477, %v374, %v460
      %v485 = vsel %vm477, %v376, %v462
      %v486 = vsel %vm477, %v378, %v464
      %v487 = vsel %vm477, %v394, %v466
      %v488 = vld [vmem:[%s0] sm:$0xff]
      %v489 = vld [vmem:[%s0 + $0x8] sm:$0xff]
      %s490 = scalar_lea.vmem %s0, 16
      %v491 = vld [vmem:[%s490] sm:$0xff]
      %v492 = vld [vmem:[%s490 + $0x8] sm:$0xff]
      %vm493 = vcmask 130048
      %v495 = vsel %vm493, %v479, 0
      %v498 = vsel %vm493, %v481, 0
      %v501 = vsel %vm493, %v483, 0
      %v504 = vsel %vm493, %v485, 0
      %506 = vmatprep.subr.mxu0 0.0
      %507 = vmatpush1.msra.mxu0 %v491
      %508 = vmatprep.subr.mxu0 0.0
      %509 = vmatpush1.msra.mxu0 %v492
      %510 = vmatprep.subr.mxu0 0.0
      %511 = vmatpush1.msra.mxu0 0.0
      %512 = vmatprep.subr.mxu0 0.0
      %513 = vmatpush1.msra.mxu0 0.0
      %514 = vmatprep.subr.mxu0 0.0
      %515 = vmatpush1.msra.mxu0 0.0
      %516 = vmatprep.subr.mxu0 0.0
      %517 = vmatpush1.msra.mxu0 0.0
      %518 = vmatprep.subr.mxu0 0.0
      %519 = vmatpush1.msra.mxu0 0.0
      %520 = vmatprep.subr.mxu0 0.0
      %521 = vmatpush1.msra.mxu0 0.0
      %522 = vmatprep.subr.mxu0 0.0
      %523 = vmatpush1.msra.mxu0 0.0
      %524 = vmatprep.subr.mxu0 0.0
      %525 = vmatpush1.msra.mxu0 0.0
      %526 = vmatprep.subr.mxu0 0.0
      %527 = vmatpush1.msra.mxu0 0.0
      %528 = vmatprep.subr.mxu0 0.0
      %529 = vmatpush1.msra.mxu0 0.0
      %530 = vmatprep.subr.mxu0 0.0
      %531 = vmatpush1.msra.mxu0 0.0
      %532 = vmatprep.subr.mxu0 0.0
      %533 = vmatpush1.msra.mxu0 0.0
      %534 = vmatprep.subr.mxu0 0.0
      %535 = vmatpush1.msra.mxu0 0.0
      %536 = vmatprep.subr.mxu0 0.0
      %537 = vmatpush1.msra.mxu0 0.0
      %538 = vmatprep.subr.mxu0 0.0
      %539 = vmatpush1.msra.mxu0 0.0
      %540 = vmatprep.subr.mxu0 0.0
      %541 = vmatpush1.msra.mxu0 0.0
      %542 = vmatprep.subr.mxu0 0.0
      %543 = vmatpush1.msra.mxu0 0.0
      %544 = vmatprep.subr.mxu0 0.0
      %545 = vmatpush1.msra.mxu0 0.0
      %546 = vmatprep.subr.mxu0 0.0
      %547 = vmatpush1.msra.mxu0 0.0
      %548 = vmatprep.subr.mxu0 0.0
      %549 = vmatpush1.msra.mxu0 0.0
      %550 = vmatprep.subr.mxu0 0.0
      %551 = vmatpush1.msra.mxu0 0.0
      %552 = vmatprep.subr.mxu0 0.0
      %553 = vmatpush1.msra.mxu0 0.0
      %554 = vmatprep.subr.mxu0 0.0
      %555 = vmatpush1.msra.mxu0 0.0
      %556 = vmatprep.subr.mxu0 0.0
      %557 = vmatpush1.msra.mxu0 0.0
      %558 = vmatprep.subr.mxu0 0.0
      %559 = vmatpush1.msra.mxu0 0.0
      %560 = vmatprep.subr.mxu0 0.0
      %561 = vmatpush1.msra.mxu0 0.0
      %562 = vmatprep.subr.mxu0 0.0
      %563 = vmatpush1.msra.mxu0 0.0
      %564 = vmatprep.subr.mxu0 0.0
      %565 = vmatpush1.msra.mxu0 0.0
      %566 = vmatprep.subr.mxu0 0.0
      %567 = vmatpush1.msra.mxu0 0.0
      %568 = vmatprep.subr.mxu0 0.0
      %569 = vmatpush1.msra.mxu0 0.0
      %570 = vmatprep.mubr.f32.mxu0 0.0
      %571 = vmatmul.mubr.f32.gmra.mrb[0].mxu0 %v495
      %v572 = vpop.f32.mrb[0].mxu0
      %v573 = vadd.f32 0.0, %v572
      %v574 = vpop.f32.mrb[0].mxu0
      %575 = vmatprep.mubr.f32.mxu0 0.0
      %576 = vmatmul.mubr.f32.gmra.mrb[0].mxu0 %v498
      %v577 = vpop.f32.mrb[0].mxu0
      %v578 = vadd.f32 0.0, %v577
      %v579 = vpop.f32.mrb[0].mxu0
      %580 = vmatprep.mubr.f32.mxu0 0.0
      %581 = vmatmul.mubr.f32.gmra.mrb[0].mxu0 %v501
      %v582 = vpop.f32.mrb[0].mxu0
      %v583 = vadd.f32 0.0, %v582
      %v584 = vpop.f32.mrb[0].mxu0
      %585 = vmatprep.mubr.f32.mxu0 0.0
      %586 = vmatmul.mubr.f32.gmra.mrb[0].mxu0 %v504
      %v587 = vpop.f32.mrb[0].mxu0
      %v588 = vadd.f32 0.0, %v587
      %v589 = vpop.f32.mrb[0].mxu0
      %590 = vdwg.mxu0
      %v592 = vsel %vm493, %v478, 0
      %v595 = vsel %vm493, %v480, 0
      %v598 = vsel %vm493, %v482, 0
      %v601 = vsel %vm493, %v484, 0
      %603 = vmatprep.subr.mxu0 0.0
      %604 = vmatpush1.msra.mxu0 %v488
      %605 = vmatprep.subr.mxu0 0.0
      %606 = vmatpush1.msra.mxu0 %v489
      %607 = vmatprep.subr.mxu0 0.0
      %608 = vmatpush1.msra.mxu0 0.0
      %609 = vmatprep.subr.mxu0 0.0
      %610 = vmatpush1.msra.mxu0 0.0
      %611 = vmatprep.subr.mxu0 0.0
      %612 = vmatpush1.msra.mxu0 0.0
      %613 = vmatprep.subr.mxu0 0.0
      %614 = vmatpush1.msra.mxu0 0.0
      %615 = vmatprep.subr.mxu0 0.0
      %616 = vmatpush1.msra.mxu0 0.0
      %617 = vmatprep.subr.mxu0 0.0
      %618 = vmatpush1.msra.mxu0 0.0
      %619 = vmatprep.subr.mxu0 0.0
      %620 = vmatpush1.msra.mxu0 0.0
      %621 = vmatprep.subr.mxu0 0.0
      %622 = vmatpush1.msra.mxu0 0.0
      %623 = vmatprep.subr.mxu0 0.0
      %624 = vmatpush1.msra.mxu0 0.0
      %625 = vmatprep.subr.mxu0 0.0
      %626 = vmatpush1.msra.mxu0 0.0
      %627 = vmatprep.subr.mxu0 0.0
      %628 = vmatpush1.msra.mxu0 0.0
      %629 = vmatprep.subr.mxu0 0.0
      %630 = vmatpush1.msra.mxu0 0.0
      %631 = vmatprep.subr.mxu0 0.0
      %632 = vmatpush1.msra.mxu0 0.0
      %633 = vmatprep.subr.mxu0 0.0
      %634 = vmatpush1.msra.mxu0 0.0
      %635 = vmatprep.subr.mxu0 0.0
      %636 = vmatpush1.msra.mxu0 0.0
      %637 = vmatprep.subr.mxu0 0.0
      %638 = vmatpush1.msra.mxu0 0.0
      %639 = vmatprep.subr.mxu0 0.0
      %640 = vmatpush1.msra.mxu0 0.0
      %641 = vmatprep.subr.mxu0 0.0
      %642 = vmatpush1.msra.mxu0 0.0
      %643 = vmatprep.subr.mxu0 0.0
      %644 = vmatpush1.msra.mxu0 0.0
      %645 = vmatprep.subr.mxu0 0.0
      %646 = vmatpush1.msra.mxu0 0.0
      %647 = vmatprep.subr.mxu0 0.0
      %648 = vmatpush1.msra.mxu0 0.0
      %649 = vmatprep.subr.mxu0 0.0
      %650 = vmatpush1.msra.mxu0 0.0
      %651 = vmatprep.subr.mxu0 0.0
      %652 = vmatpush1.msra.mxu0 0.0
      %653 = vmatprep.subr.mxu0 0.0
      %654 = vmatpush1.msra.mxu0 0.0
      %655 = vmatprep.subr.mxu0 0.0
      %656 = vmatpush1.msra.mxu0 0.0
      %657 = vmatprep.subr.mxu0 0.0
      %658 = vmatpush1.msra.mxu0 0.0
      %659 = vmatprep.subr.mxu0 0.0
      %660 = vmatpush1.msra.mxu0 0.0
      %661 = vmatprep.subr.mxu0 0.0
      %662 = vmatpush1.msra.mxu0 0.0
      %663 = vmatprep.subr.mxu0 0.0
      %664 = vmatpush1.msra.mxu0 0.0
      %665 = vmatprep.subr.mxu0 0.0
      %666 = vmatpush1.msra.mxu0 0.0
      %667 = vmatprep.mubr.f32.mxu0 0.0
      %668 = vmatmul.mubr.f32.gmra.mrb[0].mxu0 %v592
      %v669 = vpop.f32.mrb[0].mxu0
      %v670 = vadd.f32 %v573, %v669
      %v671 = vpop.f32.mrb[0].mxu0
      %672 = vmatprep.mubr.f32.mxu0 0.0
      %673 = vmatmul.mubr.f32.gmra.mrb[0].mxu0 %v595
      %v674 = vpop.f32.mrb[0].mxu0
      %v675 = vadd.f32 %v578, %v674
      %v676 = vpop.f32.mrb[0].mxu0
      %677 = vmatprep.mubr.f32.mxu0 0.0
      %678 = vmatmul.mubr.f32.gmra.mrb[0].mxu0 %v598
      %v679 = vpop.f32.mrb[0].mxu0
      %v680 = vadd.f32 %v583, %v679
      %v681 = vpop.f32.mrb[0].mxu0
      %682 = vmatprep.mubr.f32.mxu0 0.0
      %683 = vmatmul.mubr.f32.gmra.mrb[0].mxu0 %v601
      %v684 = vpop.f32.mrb[0].mxu0
      %v685 = vadd.f32 %v588, %v684
      %v686 = vpop.f32.mrb[0].mxu0
      %687 = vdwg.mxu0
      %s688 = scalar_lea.vmem %s0, 32
      %v689 = vld [vmem:[%s688] sm:$0xff]
      %v690 = vld [vmem:[%s688 + $0x8] sm:$0xff]
      %v692 = vsel %vm493, %v486, 0
      %694 = vmatprep.subr.mxu0 0.0
      %695 = vmatpush1.msra.mxu0 %v689
      %696 = vmatprep.subr.mxu0 0.0
      %697 = vmatpush1.msra.mxu0 %v690
      %698 = vmatprep.subr.mxu0 0.0
      %699 = vmatpush1.msra.mxu0 0.0
      %700 = vmatprep.subr.mxu0 0.0
      %701 = vmatpush1.msra.mxu0 0.0
      %702 = vmatprep.subr.mxu0 0.0
      %703 = vmatpush1.msra.mxu0 0.0
      %704 = vmatprep.subr.mxu0 0.0
      %705 = vmatpush1.msra.mxu0 0.0
      %706 = vmatprep.subr.mxu0 0.0
      %707 = vmatpush1.msra.mxu0 0.0
      %708 = vmatprep.subr.mxu0 0.0
      %709 = vmatpush1.msra.mxu0 0.0
      %710 = vmatprep.subr.mxu0 0.0
      %711 = vmatpush1.msra.mxu0 0.0
      %712 = vmatprep.subr.mxu0 0.0
      %713 = vmatpush1.msra.mxu0 0.0
      %714 = vmatprep.subr.mxu0 0.0
      %715 = vmatpush1.msra.mxu0 0.0
      %716 = vmatprep.subr.mxu0 0.0
      %717 = vmatpush1.msra.mxu0 0.0
      %718 = vmatprep.subr.mxu0 0.0
      %719 = vmatpush1.msra.mxu0 0.0
      %720 = vmatprep.subr.mxu0 0.0
      %721 = vmatpush1.msra.mxu0 0.0
      %722 = vmatprep.subr.mxu0 0.0
      %723 = vmatpush1.msra.mxu0 0.0
      %724 = vmatprep.subr.mxu0 0.0
      %725 = vmatpush1.msra.mxu0 0.0
      %726 = vmatprep.subr.mxu0 0.0
      %727 = vmatpush1.msra.mxu0 0.0
      %728 = vmatprep.subr.mxu0 0.0
      %729 = vmatpush1.msra.mxu0 0.0
      %730 = vmatprep.subr.mxu0 0.0
      %731 = vmatpush1.msra.mxu0 0.0
      %732 = vmatprep.subr.mxu0 0.0
      %733 = vmatpush1.msra.mxu0 0.0
      %734 = vmatprep.subr.mxu0 0.0
      %735 = vmatpush1.msra.mxu0 0.0
      %736 = vmatprep.subr.mxu0 0.0
      %737 = vmatpush1.msra.mxu0 0.0
      %738 = vmatprep.subr.mxu0 0.0
      %739 = vmatpush1.msra.mxu0 0.0
      %740 = vmatprep.subr.mxu0 0.0
      %741 = vmatpush1.msra.mxu0 0.0
      %742 = vmatprep.subr.mxu0 0.0
      %743 = vmatpush1.msra.mxu0 0.0
      %744 = vmatprep.subr.mxu0 0.0
      %745 = vmatpush1.msra.mxu0 0.0
      %746 = vmatprep.subr.mxu0 0.0
      %747 = vmatpush1.msra.mxu0 0.0
      %748 = vmatprep.subr.mxu0 0.0
      %749 = vmatpush1.msra.mxu0 0.0
      %750 = vmatprep.subr.mxu0 0.0
      %751 = vmatpush1.msra.mxu0 0.0
      %752 = vmatprep.subr.mxu0 0.0
      %753 = vmatpush1.msra.mxu0 0.0
      %754 = vmatprep.subr.mxu0 0.0
      %755 = vmatpush1.msra.mxu0 0.0
      %756 = vmatprep.subr.mxu0 0.0
      %757 = vmatpush1.msra.mxu0 0.0
      %758 = vmatprep.mubr.f32.mxu0 0.0
      %759 = vmatmul.mubr.f32.gmra.mrb[0].mxu0 %v595
      %v760 = vpop.f32.mrb[0].mxu0
      %v761 = vadd.f32 0.0, %v760
      %v762 = vpop.f32.mrb[0].mxu0
      %763 = vmatprep.mubr.f32.mxu0 0.0
      %764 = vmatmul.mubr.f32.gmra.mrb[0].mxu0 %v598
      %v765 = vpop.f32.mrb[0].mxu0
      %v766 = vadd.f32 0.0, %v765
      %v767 = vpop.f32.mrb[0].mxu0
      %768 = vmatprep.mubr.f32.mxu0 0.0
      %769 = vmatmul.mubr.f32.gmra.mrb[0].mxu0 %v601
      %v770 = vpop.f32.mrb[0].mxu0
      %v771 = vadd.f32 0.0, %v770
      %v772 = vpop.f32.mrb[0].mxu0
      %773 = vmatprep.mubr.f32.mxu0 0.0
      %774 = vmatmul.mubr.f32.gmra.mrb[0].mxu0 %v692
      %v775 = vpop.f32.mrb[0].mxu0
      %v776 = vadd.f32 0.0, %v775
      %v777 = vpop.f32.mrb[0].mxu0
      %778 = vdwg.mxu0
      %v779 = vadd.f32 %v670, %v761
      %v780 = vadd.f32 %v675, %v766
      %v781 = vadd.f32 %v680, %v771
      %v782 = vadd.f32 %v685, %v776
      %s783 = scalar_lea.vmem %s0, 48
      %v784 = vld [vmem:[%s783] sm:$0xff]
      %v785 = vld [vmem:[%s783 + $0x8] sm:$0xff]
      %v787 = vsel %vm493, %v487, 0
      %789 = vmatprep.subr.mxu0 0.0
      %790 = vmatpush1.msra.mxu0 %v784
      %791 = vmatprep.subr.mxu0 0.0
      %792 = vmatpush1.msra.mxu0 %v785
      %793 = vmatprep.subr.mxu0 0.0
      %794 = vmatpush1.msra.mxu0 0.0
      %795 = vmatprep.subr.mxu0 0.0
      %796 = vmatpush1.msra.mxu0 0.0
      %797 = vmatprep.subr.mxu0 0.0
      %798 = vmatpush1.msra.mxu0 0.0
      %799 = vmatprep.subr.mxu0 0.0
      %800 = vmatpush1.msra.mxu0 0.0
      %801 = vmatprep.subr.mxu0 0.0
      %802 = vmatpush1.msra.mxu0 0.0
      %803 = vmatprep.subr.mxu0 0.0
      %804 = vmatpush1.msra.mxu0 0.0
      %805 = vmatprep.subr.mxu0 0.0
      %806 = vmatpush1.msra.mxu0 0.0
      %807 = vmatprep.subr.mxu0 0.0
      %808 = vmatpush1.msra.mxu0 0.0
      %809 = vmatprep.subr.mxu0 0.0
      %810 = vmatpush1.msra.mxu0 0.0
      %811 = vmatprep.subr.mxu0 0.0
      %812 = vmatpush1.msra.mxu0 0.0
      %813 = vmatprep.subr.mxu0 0.0
      %814 = vmatpush1.msra.mxu0 0.0
      %815 = vmatprep.subr.mxu0 0.0
      %816 = vmatpush1.msra.mxu0 0.0
      %817 = vmatprep.subr.mxu0 0.0
      %818 = vmatpush1.msra.mxu0 0.0
      %819 = vmatprep.subr.mxu0 0.0
      %820 = vmatpush1.msra.mxu0 0.0
      %821 = vmatprep.subr.mxu0 0.0
      %822 = vmatpush1.msra.mxu0 0.0
      %823 = vmatprep.subr.mxu0 0.0
      %824 = vmatpush1.msra.mxu0 0.0
      %825 = vmatprep.subr.mxu0 0.0
      %826 = vmatpush1.msra.mxu0 0.0
      %827 = vmatprep.subr.mxu0 0.0
      %828 = vmatpush1.msra.mxu0 0.0
      %829 = vmatprep.subr.mxu0 0.0
      %830 = vmatpush1.msra.mxu0 0.0
      %831 = vmatprep.subr.mxu0 0.0
      %832 = vmatpush1.msra.mxu0 0.0
      %833 = vmatprep.subr.mxu0 0.0
      %834 = vmatpush1.msra.mxu0 0.0
      %835 = vmatprep.subr.mxu0 0.0
      %836 = vmatpush1.msra.mxu0 0.0
      %837 = vmatprep.subr.mxu0 0.0
      %838 = vmatpush1.msra.mxu0 0.0
      %839 = vmatprep.subr.mxu0 0.0
      %840 = vmatpush1.msra.mxu0 0.0
      %841 = vmatprep.subr.mxu0 0.0
      %842 = vmatpush1.msra.mxu0 0.0
      %843 = vmatprep.subr.mxu0 0.0
      %844 = vmatpush1.msra.mxu0 0.0
      %845 = vmatprep.subr.mxu0 0.0
      %846 = vmatpush1.msra.mxu0 0.0
      %847 = vmatprep.subr.mxu0 0.0
      %848 = vmatpush1.msra.mxu0 0.0
      %849 = vmatprep.subr.mxu0 0.0
      %850 = vmatpush1.msra.mxu0 0.0
      %851 = vmatprep.subr.mxu0 0.0
      %852 = vmatpush1.msra.mxu0 0.0
      %853 = vmatprep.mubr.f32.mxu0 0.0
      %854 = vmatmul.mubr.f32.gmra.mrb[0].mxu0 %v498
      %v855 = vpop.f32.mrb[0].mxu0
      %v856 = vadd.f32 0.0, %v855
      %v857 = vpop.f32.mrb[0].mxu0
      %858 = vmatprep.mubr.f32.mxu0 0.0
      %859 = vmatmul.mubr.f32.gmra.mrb[0].mxu0 %v501
      %v860 = vpop.f32.mrb[0].mxu0
      %v861 = vadd.f32 0.0, %v860
      %v862 = vpop.f32.mrb[0].mxu0
      %863 = vmatprep.mubr.f32.mxu0 0.0
      %864 = vmatmul.mubr.f32.gmra.mrb[0].mxu0 %v504
      %v865 = vpop.f32.mrb[0].mxu0
      %v866 = vadd.f32 0.0, %v865
      %v867 = vpop.f32.mrb[0].mxu0
      %868 = vmatprep.mubr.f32.mxu0 0.0
      %869 = vmatmul.mubr.f32.gmra.mrb[0].mxu0 %v787
      %v870 = vpop.f32.mrb[0].mxu0
      %v871 = vadd.f32 0.0, %v870
      %v872 = vpop.f32.mrb[0].mxu0
      %873 = vdwg.mxu0
      %v874 = vadd.f32 %v779, %v856
      %v875 = vadd.f32 %v780, %v861
      %v876 = vadd.f32 %v781, %v866
      %v877 = vadd.f32 %v782, %v871
      %878 = vst.msk [vmem:[%s362] sm:$0xff] %vm477, %v874
      %879 = vst.msk [vmem:[%s362 + $0x8] sm:$0xff] %vm477, %v875
      %880 = vst.msk [vmem:[%s362 + $0x10] sm:$0xff] %vm477, %v876
      %881 = vst.msk [vmem:[%s362 + $0x18] sm:$0xff] %vm477, %v877
      %s882 = smul.u32 4, %s20
      %p883 = scmp.lt.s32.totalorder %s19, 1
      %s884 = scalar_select %p883, %s19, 1
      %p885 = scmp.lt.s32.totalorder %s882, 7
      %s886 = scalar_select %p885, %s882, 7
      %s887 = smul.addr %s884, 8
      %s888 = sadd.s32 %s886, %s887
      %s889 = smul.addr %s888, 8
      %s890 = scalar_lea.vmem %s4, %s889
      // Predicated region
      $region37: #{downsample_forward.1} parent=35 // pred_check
        %p891 = pneg %p168
      $region38: #{downsample_forward.1} parent=35 // pred_check_branch
        %893 = sbr.rel (%p891) target = $region40
      $region39: #{downsample_forward.1} parent=35 // pred_region
        %s894 = smul.u32 4, %s20
      $region40: #{downsample_forward.1} parent=35 // pred_fallthru
        _
    $region36: #{downsample_forward.1} parent=5 // pred_fallthru
      _
    %p895 = scmp.le.s32.totalorder 2, %s10
    // Predicated region
    $region41: #{downsample_forward.1} parent=5 // pred_check
      %p896 = pneg %p895
    $region42: #{downsample_forward.1} parent=5 // pred_check_branch
      %898 = sbr.rel (%p896) target = $region44
    $region43: #{downsample_forward.1} parent=5 // pred_region
      %s899 = ssub.s32 %s10, 2
      // Predicated region
      $region45: #{downsample_forward.1} parent=43 // pred_check
        %p900 = pneg %p174
      $region46: #{downsample_forward.1} parent=43 // pred_check_branch
        %902 = sbr.rel (%p900) target = $region48
      $region47: #{downsample_forward.1} parent=43 // pred_region
        %s903 = smul.u32 4, %s22
        %p904 = scmp.lt.s32.totalorder %s21, 1
        %s905 = scalar_select %p904, %s21, 1
        %p906 = scmp.lt.s32.totalorder %s903, 7
        %s907 = scalar_select %p906, %s903, 7
        %s908 = smul.addr %s905, 8
        %s909 = sadd.s32 %s907, %s908
        %s910 = smul.addr %s909, 8
        %s911 = scalar_lea.vmem %s4, %s910
      $region48: #{downsample_forward.1} parent=43 // pred_fallthru
        _
    $region44: #{downsample_forward.1} parent=5 // pred_fallthru
      _
  $region6: #{downsample_forward.1} parent=0 // loop_footer
    %s14 = sadd.s32 1, %s10
  $region7: #{downsample_forward.1} parent=0 // loop_footer_branch
    %9 = sbr.rel target = $region3
  $region8: #{downsample_forward.1} parent=0 // loop_exit
    _

</llo_original>
